<compile_context>
chip_gen: v7x
topology: tpu7x:2x2x1
jax: 0.10.0
libtpu: 0.0.40
codegen_flags: <defaults>
</compile_context>

<pallas_src>
import functools
import math

import jax
import jax.numpy as jnp
from jax.experimental import pallas as pl
from jax.experimental.pallas import tpu as pltpu


def _round_up(x: int, m: int) -> int:
    return ((x + m - 1) // m) * m


@functools.lru_cache(maxsize=1)
def _default_vmem_limit_bytes() -> int:
    """Scoped-VMEM limit derived from the actual chip (v7x: 64 MiB/TC)."""
    cap = 64 * 1024 * 1024  # conservative fallback (v7x per-TC)
    try:
        info = pltpu.get_tpu_info()
        cap = int(getattr(info, "vmem_capacity_bytes", cap) or cap)
    except Exception:
        pass
    return min(cap * 3 // 4, 48 * 1024 * 1024)


# ----------------------------- kernel bodies --------------------------------

def _atomwise_linear_kernel(x_ref, w_ref, o_ref):
    # One tile of packed atom rows x full (lane-dense) feature dims -> MXU.
    o_ref[...] = jnp.dot(
        x_ref[...], w_ref[...], preferred_element_type=jnp.float32
    ).astype(o_ref.dtype)


def _atomwise_linear_bias_kernel(x_ref, w_ref, b_ref, o_ref):
    acc = jnp.dot(x_ref[...], w_ref[...], preferred_element_type=jnp.float32)
    # Fused epilogue: per-channel bias add is free (VPU slots are idle here).
    o_ref[...] = (acc + b_ref[...].astype(jnp.float32)).astype(o_ref.dtype)


# ------------------------------- wrapper -------------------------------------

def pack_weight(w: jax.Array, pack: int) -> jax.Array:
    """blockdiag(w, ..., w) with `pack` copies -> [pack*c_in, pack*c_out]."""
    if pack == 1:
        return w
    c_in, c_out = w.shape
    eye = jnp.eye(pack, dtype=w.dtype)
    return jnp.einsum("pq,io->piqo", eye, w).reshape(pack * c_in, pack * c_out)


def atomwise_linear(
    x: jax.Array,
    w_packed: jax.Array,
    *,
    pack: int,
    c_out: int,
    bias_packed=None,
    max_tile_rows=None,
    vmem_limit_bytes=None,
    out_dtype=None,
) -> jax.Array:
    """y[a, :] = x[a, :] @ W (+ b) for every atom a (W packed as a blockdiag)."""
    n_atoms, c_in = x.shape
    lanes_in, lanes_out = w_packed.shape
    assert lanes_in == pack * c_in and lanes_out == pack * c_out
    out_dtype = x.dtype if out_dtype is None else out_dtype

    if w_packed.dtype != x.dtype:
        # Fallback only; AtomwiseOperation pre-casts both dtypes in __init__.
        w_packed = w_packed.astype(x.dtype)

    itemsize = jnp.dtype(x.dtype).itemsize
    out_itemsize = jnp.dtype(out_dtype).itemsize
    w_itemsize = jnp.dtype(w_packed.dtype).itemsize
    row_granule = max(8, 32 // itemsize)  # sublane granule: 8 f32 / 16 bf16

    # --- minimal ragged handling ---------------------------------------------
    # Pad only so the lane-dense packing reshape is valid (n_atoms % pack == 0);
    # at most pack-1 extra rows.  The tail of the last tile is handled by
    # Pallas' partial-block masking, not by padding to a tile multiple.
    pad_atoms = (-n_atoms) % pack
    if pad_atoms:
        x = jnp.pad(x, ((0, pad_atoms), (0, 0)))
    n_atoms_p = n_atoms + pad_atoms
    rows = n_atoms_p // pack
    x2 = x.reshape(rows, lanes_in)  # row-major reshape: free (bitcast)

    # --- generation-aware tile sizing ----------------------------------------
    vmem_limit = int(vmem_limit_bytes or _default_vmem_limit_bytes())
    if max_tile_rows is None:
        w_bytes = 2 * lanes_in * lanes_out * w_itemsize          # dbl-buffered weight
        per_row = 2 * (lanes_in * itemsize + lanes_out * out_itemsize)
        budget = max(vmem_limit - w_bytes - (4 << 20), per_row * row_granule)
        target_rows = (4 << 20) // max(1, lanes_in * itemsize)   # ~4 MiB input tile
        max_tile_rows = max(row_granule, min(target_rows, budget // per_row))
    max_tile_rows = max(row_granule, (int(max_tile_rows) // row_granule) * row_granule)

    tile_rows = min(max_tile_rows, _round_up(rows, row_granule))
    grid = (pl.cdiv(rows, tile_rows),)  # partial last block masked by Pallas

    # Honest scheduler hint: true FLOPs (no block-diag zeros), actual bytes.
    cost = pl.CostEstimate(
        flops=2 * n_atoms * c_in * c_out,
        transcendentals=0,
        bytes_accessed=(
            rows * lanes_in * itemsize
            + lanes_in * lanes_out * w_itemsize
            + rows * lanes_out * out_itemsize
        ),
    )

    in_specs = [
        # big atom tiles, full (lane-dense) feature extent
        pl.BlockSpec((tile_rows, lanes_in), lambda i: (i, 0)),
        # weight: constant block index -> DMA'd once, resident across steps
        pl.BlockSpec((lanes_in, lanes_out), lambda i: (0, 0)),
    ]
    operands = [x2, w_packed]
    kernel = _atomwise_linear_kernel
    if bias_packed is not None:
        b2 = bias_packed.reshape(1, lanes_out)  # kept f32; added to f32 acc
        in_specs.append(pl.BlockSpec((1, lanes_out), lambda i: (0, 0)))
        operands.append(b2)
        kernel = _atomwise_linear_bias_kernel

    y2 = pl.pallas_call(
        kernel,
        out_shape=jax.ShapeDtypeStruct((rows, lanes_out), out_dtype),
        grid_spec=pltpu.PrefetchScalarGridSpec(
            num_scalar_prefetch=0,
            grid=grid,
            in_specs=in_specs,
            out_specs=pl.BlockSpec((tile_rows, lanes_out), lambda i: (i, 0)),
        ),
        compiler_params=pltpu.CompilerParams(
            dimension_semantics=("parallel",),     # shard grid across TCs (v7x)
            vmem_limit_bytes=vmem_limit,
        ),
        cost_estimate=cost,
    )(*operands)

    # unpack rows back to per-atom layout (row-major reshape, free)
    y = y2.reshape(n_atoms_p, c_out)
    return y[:n_atoms] if pad_atoms else y


class AtomwiseOperation:
    """JAX/Pallas analog of nequip.nn.AtomwiseOperation.

    `operation` here is an e3nn-style Linear over scalar irreps (with e3nn's
    1/sqrt(fan_in) path normalization folded into the weight), optionally with
    a per-channel bias fused into the kernel epilogue.
    """
    # TODO(synk): arbitrary e3nn `operation` modules (mixed irreps / tensor
    # products) are not translated; only the scalar-irreps Linear case is.

    def __init__(self, field: str, c_in: int, c_out: int, key: jax.Array,
                 *, bias: bool = False, max_tile_rows=None):
        self.field = field
        self.c_in = c_in
        self.c_out = c_out
        self.max_tile_rows = max_tile_rows

        k_w, k_b = jax.random.split(key)
        w = jax.random.normal(k_w, (c_in, c_out), dtype=jnp.float32)
        self.weight = w / math.sqrt(c_in)
        self.bias = (jax.random.normal(k_b, (c_out,), dtype=jnp.float32)
                     if bias else None)

        # Lane-dense packing: floor(128/c_in) atoms per row via a blockdiag
        # weight, built once here (works even when c_in does not divide 128).
        self.pack = max(1, 128 // c_in) if c_in <= 128 else 1
        wp = pack_weight(self.weight, self.pack)
        # Real bf16 contract: both precisions pre-cast once (no per-call cast).
        self._w_packed = {
            jnp.dtype(jnp.float32): wp,
            jnp.dtype(jnp.bfloat16): wp.astype(jnp.bfloat16),
        }
        self._bias_packed = (jnp.tile(self.bias, self.pack)
                             if self.bias is not None else None)
        # TODO(synk): for c_in/c_out not dividing 128, zero-pad the packed
        # weight rows/cols to the next 128 multiple to recover fully unmasked
        # 128-lane loads/stores.

    def __call__(self, data: dict) -> dict:
        out = dict(data)
        x = data[self.field]
        wp = self._w_packed.get(jnp.dtype(x.dtype))
        if wp is None:  # uncommon dtype: one-off cast fallback
            wp = self._w_packed[jnp.dtype(jnp.float32)].astype(x.dtype)
        out[self.field] = atomwise_linear(
            x, wp,
            pack=self.pack,
            c_out=self.c_out,
            bias_packed=self._bias_packed,
            max_tile_rows=self.max_tile_rows,
        )
        return out


if __name__ == "__main__":
    key = jax.random.PRNGKey(0)
    k_x, k_w, k_xr, k_xr2, k_b, k_g = jax.random.split(key, 6)

    n_atoms, c_in, c_out = 128, 32, 32
    field = "node_features"

    x = jax.random.normal(k_x, (n_atoms, c_in), dtype=jnp.float32)
    data = {
        field: x,
        "pos": jax.random.normal(jax.random.PRNGKey(1), (n_atoms, 3), jnp.float32),
    }

    module = AtomwiseOperation(field=field, c_in=c_in, c_out=c_out, key=k_w)

    # f32 path
    out = module(data)
    y = jax.block_until_ready(out[field])
    y_ref = x @ module.weight
    assert y.shape == (n_atoms, c_out)
    assert jnp.allclose(y, y_ref, atol=1e-5, rtol=1e-4)
    # other fields pass through untouched
    assert jnp.array_equal(out["pos"], data["pos"])

    # ragged atom counts: 100 (no pad needed, 100 % pack == 0) and 97 (pads
    # only 3 rows to satisfy the packing reshape; tail tile masked in-kernel)
    for k_r, n_r in ((k_xr, 100), (k_xr2, 97)):
        x_r = jax.random.normal(k_r, (n_r, c_in), dtype=jnp.float32)
        y_r = jax.block_until_ready(module({field: x_r})[field])
        assert y_r.shape == (n_r, c_out)
        assert jnp.allclose(y_r, x_r @ module.weight, atol=1e-5, rtol=1e-4)

    # bf16 I/O path (weight pre-cast in __init__; f32 MXU accumulation)
    y_bf16 = jax.block_until_ready(module({field: x.astype(jnp.bfloat16)})[field])
    assert y_bf16.dtype == jnp.bfloat16
    assert jnp.allclose(y_bf16.astype(jnp.float32), y_ref, atol=0.15, rtol=0.1)

    # fused bias epilogue
    module_b = AtomwiseOperation(field=field, c_in=c_in, c_out=c_out,
                                 key=k_b, bias=True)
    y_b = jax.block_until_ready(module_b({field: x})[field])
    assert jnp.allclose(y_b, x @ module_b.weight + module_b.bias,
                        atol=1e-5, rtol=1e-4)

    # irrep widths that do not divide 128 (generalized packing, pack=2)
    module_g = AtomwiseOperation(field=field, c_in=48, c_out=24, key=k_g)
    x_g = jax.random.normal(jax.random.PRNGKey(2), (64, 48), dtype=jnp.float32)
    y_g = jax.block_until_ready(module_g({field: x_g})[field])
    assert y_g.shape == (64, 24)
    assert jnp.allclose(y_g, x_g @ module_g.weight, atol=1e-5, rtol=1e-4)

    print("KERNEL_OK")
</pallas_src>

<mosaic_0001>
module attributes {stable_mosaic.version = 11 : i64} {
  func.func @_atomwise_linear_kernel(%arg0: i32, %arg1: memref<32x128xf32, #tpu.memory_space<vmem>>, %arg2: memref<128x128xf32, #tpu.memory_space<vmem>>, %arg3: memref<32x128xf32, #tpu.memory_space<vmem>>) attributes {dimension_semantics = [#tpu.dimension_semantics<parallel>], iteration_bounds = array<i64: 1>, scalar_prefetch = 0 : i64, scratch_operands = 0 : i64, tpu.core_type = #tpu.core_type<tc>, window_params = [{transform_indices = @transform_0, window_bounds = array<i64: 32, 128>}, {pipeline_mode = #tpu.pipeline_mode<synchronous>, transform_indices = @transform_1, window_bounds = array<i64: 128, 128>}, {transform_indices = @transform_2, window_bounds = array<i64: 32, 128>}]} {
    %c0 = arith.constant 0 : index
    %c0_0 = arith.constant 0 : index
    %0 = vector.load %arg1[%c0, %c0_0] : memref<32x128xf32, #tpu.memory_space<vmem>>, vector<32x128xf32>
    %c0_1 = arith.constant 0 : index
    %c0_2 = arith.constant 0 : index
    %1 = vector.load %arg2[%c0_1, %c0_2] : memref<128x128xf32, #tpu.memory_space<vmem>>, vector<128x128xf32>
    %cst = arith.constant dense<0.000000e+00> : vector<32x128xf32>
    %2 = tpu.matmul %0, %1, %cst {dimension_numbers = #tpu.dot_dimension_numbers<[1], [0], [0], [1], [0, 0, 1, 1], [], []>} : vector<32x128xf32>, vector<128x128xf32>, vector<32x128xf32> -> vector<32x128xf32>
    %c0_3 = arith.constant 0 : index
    %c0_4 = arith.constant 0 : index
    %3 = vector.load %arg3[%c0_3, %c0_4] : memref<32x128xf32, #tpu.memory_space<vmem>>, vector<32x128xf32>
    tpu.vector_store %arg3[%c0_3, %c0_4], %2 {strides = array<i32>} : memref<32x128xf32, #tpu.memory_space<vmem>>, vector<32x128xf32>,
    return
  }
  func.func @transform_0(%arg0: i32) -> (i32, i32) {
    %c0_i32 = arith.constant 0 : i32
    %c0_i32_0 = arith.constant 0 : i32
    return %arg0, %c0_i32 : i32, i32
  }
  func.func @transform_1(%arg0: i32) -> (i32, i32) {
    %c0_i32 = arith.constant 0 : i32
    %c0_i32_0 = arith.constant 0 : i32
    %c0_i32_1 = arith.constant 0 : i32
    return %c0_i32, %c0_i32_0 : i32, i32
  }
  func.func @transform_2(%arg0: i32) -> (i32, i32) {
    %c0_i32 = arith.constant 0 : i32
    %c0_i32_0 = arith.constant 0 : i32
    return %arg0, %c0_i32 : i32, i32
  }
}

</mosaic_0001>

<llo_original>
// kernel: tpu_custom_call.1
$region0: #{tpu_custom_call.1}
  #allocation0 [shape = 'u32[]', space=smem, size = 0x4, offset = 0x4, fixed_abs, tag = 'smem constant byte address 0x4 - core index']
  #allocation1 [shape = 'u32[144,128]{1,0:T(1,128)}', space=vmem, size = 0x12000, scoped, tag = 'internal scratch']
  %s0 = inlined_call_operand.hbm [shape: f32[32,128], index: 0, kind: input, shape index: {}]
  %s1 = inlined_call_operand.hbm [shape: f32[128,128], index: 1, kind: input, shape index: {}]
  %s2 = inlined_call_operand.hbm [shape: f32[32,128], index: 2, kind: output, shape index: {}]
  %s3 = sld [smem:[#allocation0]]
  $region26: #{tpu_custom_call.1} parent=0
    _
  %s5 = ssub.s32 1, %s3
  %s6 = scalar_select 0, %s5, %s3
  $region1: #{tpu_custom_call.1} parent=0
    #allocation2 [shape = 'u8[16384]{0}', space=vmem, size = 0x4000, scoped, tag = 'input window, operand 0, single buffered']
    #allocation3 [shape = 's32[1]{0}', space=sflag, size = 0x4, scoped, tag = 'scoped memory for tpu_custom_call.1']
    #allocation4 [shape = 's32[1]{0}', space=sflag, size = 0x4, scoped, tag = 'scoped memory for tpu_custom_call.1']
    #allocation5 [shape = 'u8[65536]{0}', space=vmem, size = 0x10000, scoped, tag = 'input window, operand 1, single buffered']
    #allocation6 [shape = 's32[1]{0}', space=sflag, size = 0x4, scoped, tag = 'scoped memory for tpu_custom_call.1']
    #allocation7 [shape = 'u8[16384]{0}', space=vmem, size = 0x4000, scoped, tag = 'output window, operand 0, single buffered']
    %7 = vsyncpa [#allocation3], 0
    %8 = vsyncpa [#allocation6], 0
    %9 = vsyncpa [#allocation4], 0
    // Predicated region
    $region2: #{tpu_custom_call.1} parent=1 // pred_check
      _
    $region3: #{tpu_custom_call.1} parent=1 // pred_check_branch
      %11 = sbr.rel (0) target = $region5
    $region4: #{tpu_custom_call.1} parent=1 // pred_region
      %s13 = ssub.s32 512, 512
      %14 = vsyncadd [#allocation3], %s13
      %s15 = sshll.u32 [#allocation2], 4
      %s16 = int_to_ptr.vmem [resolvable:$true] %s15
      %21 = dma.hbm_to_vmem [thread:$0]  %s0, 512, %s16, [#allocation3], 128, 128, 8
    $region5: #{tpu_custom_call.1} parent=1 // pred_fallthru
      _
    // Predicated region
    $region6: #{tpu_custom_call.1} parent=1 // pred_check
      _
    $region7: #{tpu_custom_call.1} parent=1 // pred_check_branch
      %23 = sbr.rel (0) target = $region9
    $region8: #{tpu_custom_call.1} parent=1 // pred_region
      %s25 = ssub.s32 2048, 2048
      %26 = vsyncadd [#allocation6], %s25
      %s27 = sshll.u32 [#allocation5], 4
      %s28 = int_to_ptr.vmem [resolvable:$true] %s27
      %33 = dma.hbm_to_vmem [thread:$0]  %s1, 2048, %s28, [#allocation6], 128, 128, 8
    $region9: #{tpu_custom_call.1} parent=1 // pred_fallthru
      _
    // Predicated region
    $region10: #{tpu_custom_call.1} parent=1 // pred_check
      _
    $region11: #{tpu_custom_call.1} parent=1 // pred_check_branch
      %35 = sbr.rel (0) target = $region13
    $region12: #{tpu_custom_call.1} parent=1 // pred_region
      %36 = dma.done [#allocation3], 512
    $region13: #{tpu_custom_call.1} parent=1 // pred_fallthru
      _
    // Predicated region
    $region14: #{tpu_custom_call.1} parent=1 // pred_check
      _
    $region15: #{tpu_custom_call.1} parent=1 // pred_check_branch
      %38 = sbr.rel (0) target = $region17
    $region16: #{tpu_custom_call.1} parent=1 // pred_region
      %39 = dma.done [#allocation6], 2048
    $region17: #{tpu_custom_call.1} parent=1 // pred_fallthru
      _
    %v40 = vld [vmem:[#allocation2] sm:$0xff]
    %v41 = vld [vmem:[#allocation2 + $0x8] sm:$0xff]
    %v42 = vld [vmem:[#allocation2 + $0x10] sm:$0xff]
    %v43 = vld [vmem:[#allocation2 + $0x18] sm:$0xff]
    %v44 = vld [vmem:[#allocation5] sm:$0xff]
    %v45 = vld [vmem:[#allocation5 + $0x8] sm:$0xff]
    %v46 = vld [vmem:[#allocation5 + $0x10] sm:$0xff]
    %v47 = vld [vmem:[#allocation5 + $0x18] sm:$0xff]
    %v48 = vld [vmem:[#allocation5 + $0x20] sm:$0xff]
    %v49 = vld [vmem:[#allocation5 + $0x28] sm:$0xff]
    %v50 = vld [vmem:[#allocation5 + $0x30] sm:$0xff]
    %v51 = vld [vmem:[#allocation5 + $0x38] sm:$0xff]
    %v52 = vld [vmem:[#allocation5 + $0x40] sm:$0xff]
    %v53 = vld [vmem:[#allocation5 + $0x48] sm:$0xff]
    %v54 = vld [vmem:[#allocation5 + $0x50] sm:$0xff]
    %v55 = vld [vmem:[#allocation5 + $0x58] sm:$0xff]
    %v56 = vld [vmem:[#allocation5 + $0x60] sm:$0xff]
    %v57 = vld [vmem:[#allocation5 + $0x68] sm:$0xff]
    %v58 = vld [vmem:[#allocation5 + $0x70] sm:$0xff]
    %v59 = vld [vmem:[#allocation5 + $0x78] sm:$0xff]
    %60 = vmatprep.subr.mxu0 0.0
    %61 = vmatpush1.msra.mxu0 %v44
    %62 = vmatprep.subr.mxu0 0.0
    %63 = vmatpush1.msra.mxu0 %v45
    %64 = vmatprep.subr.mxu0 0.0
    %65 = vmatpush1.msra.mxu0 %v46
    %66 = vmatprep.subr.mxu0 0.0
    %67 = vmatpush1.msra.mxu0 %v47
    %68 = vmatprep.subr.mxu0 0.0
    %69 = vmatpush1.msra.mxu0 %v48
    %70 = vmatprep.subr.mxu0 0.0
    %71 = vmatpush1.msra.mxu0 %v49
    %72 = vmatprep.subr.mxu0 0.0
    %73 = vmatpush1.msra.mxu0 %v50
    %74 = vmatprep.subr.mxu0 0.0
    %75 = vmatpush1.msra.mxu0 %v51
    %76 = vmatprep.subr.mxu0 0.0
    %77 = vmatpush1.msra.mxu0 %v52
    %78 = vmatprep.subr.mxu0 0.0
    %79 = vmatpush1.msra.mxu0 %v53
    %80 = vmatprep.subr.mxu0 0.0
    %81 = vmatpush1.msra.mxu0 %v54
    %82 = vmatprep.subr.mxu0 0.0
    %83 = vmatpush1.msra.mxu0 %v55
    %84 = vmatprep.subr.mxu0 0.0
    %85 = vmatpush1.msra.mxu0 %v56
    %86 = vmatprep.subr.mxu0 0.0
    %87 = vmatpush1.msra.mxu0 %v57
    %88 = vmatprep.subr.mxu0 0.0
    %89 = vmatpush1.msra.mxu0 %v58
    %90 = vmatprep.subr.mxu0 0.0
    %91 = vmatpush1.msra.mxu0 %v59
    %92 = vmatprep.subr.mxu0 0.0
    %93 = vmatpush1.msra.mxu0 0.0
    %94 = vmatprep.subr.mxu0 0.0
    %95 = vmatpush1.msra.mxu0 0.0
    %96 = vmatprep.subr.mxu0 0.0
    %97 = vmatpush1.msra.mxu0 0.0
    %98 = vmatprep.subr.mxu0 0.0
    %99 = vmatpush1.msra.mxu0 0.0
    %100 = vmatprep.subr.mxu0 0.0
    %101 = vmatpush1.msra.mxu0 0.0
    %102 = vmatprep.subr.mxu0 0.0
    %103 = vmatpush1.msra.mxu0 0.0
    %104 = vmatprep.subr.mxu0 0.0
    %105 = vmatpush1.msra.mxu0 0.0
    %106 = vmatprep.subr.mxu0 0.0
    %107 = vmatpush1.msra.mxu0 0.0
    %108 = vmatprep.subr.mxu0 0.0
    %109 = vmatpush1.msra.mxu0 0.0
    %110 = vmatprep.subr.mxu0 0.0
    %111 = vmatpush1.msra.mxu0 0.0
    %112 = vmatprep.subr.mxu0 0.0
    %113 = vmatpush1.msra.mxu0 0.0
    %114 = vmatprep.subr.mxu0 0.0
    %115 = vmatpush1.msra.mxu0 0.0
    %116 = vmatprep.subr.mxu0 0.0
    %117 = vmatpush1.msra.mxu0 0.0
    %118 = vmatprep.subr.mxu0 0.0
    %119 = vmatpush1.msra.mxu0 0.0
    %120 = vmatprep.subr.mxu0 0.0
    %121 = vmatpush1.msra.mxu0 0.0
    %122 = vmatprep.subr.mxu0 0.0
    %123 = vmatpush1.msra.mxu0 0.0
    %124 = vmatprep.mubr.f32.mxu0 0.0
    %125 = vmatmul.mubr.f32.gmra.mrb[0].mxu0 %v40
    %v126 = vpop.f32.mrb[0].mxu0
    %v127 = vadd.f32 0.0, %v126
    %v128 = vpop.f32.mrb[0].mxu0
    %129 = vmatprep.mubr.f32.mxu0 0.0
    %130 = vmatmul.mubr.f32.gmra.mrb[0].mxu0 %v41
    %v131 = vpop.f32.mrb[0].mxu0
    %v132 = vadd.f32 0.0, %v131
    %v133 = vpop.f32.mrb[0].mxu0
    %134 = vmatprep.mubr.f32.mxu0 0.0
    %135 = vmatmul.mubr.f32.gmra.mrb[0].mxu0 %v42
    %v136 = vpop.f32.mrb[0].mxu0
    %v137 = vadd.f32 0.0, %v136
    %v138 = vpop.f32.mrb[0].mxu0
    %139 = vmatprep.mubr.f32.mxu0 0.0
    %140 = vmatmul.mubr.f32.gmra.mrb[0].mxu0 %v43
    %v141 = vpop.f32.mrb[0].mxu0
    %v142 = vadd.f32 0.0, %v141
    %v143 = vpop.f32.mrb[0].mxu0
    %144 = vdwg.mxu0
    %145 = vst [vmem:[#allocation7] sm:$0xff] %v127
    %146 = vst [vmem:[#allocation7 + $0x8] sm:$0xff] %v132
    %147 = vst [vmem:[#allocation7 + $0x10] sm:$0xff] %v137
    %148 = vst [vmem:[#allocation7 + $0x18] sm:$0xff] %v142
    // Predicated region
    $region18: #{tpu_custom_call.1} parent=1 // pred_check
      _
    $region19: #{tpu_custom_call.1} parent=1 // pred_check_branch
      %150 = sbr.rel (0) target = $region21
    $region20: #{tpu_custom_call.1} parent=1 // pred_region
      %s152 = ssub.s32 512, 512
      %153 = vsyncadd [#allocation4], %s152
      %s154 = sshll.u32 [#allocation7], 4
      %s155 = int_to_ptr.vmem [resolvable:$true] %s154
      %160 = dma.vmem_to_hbm [thread:$0]  %s155, 512, %s2, [#allocation4], 128, 128, 8
    $region21: #{tpu_custom_call.1} parent=1 // pred_fallthru
      _
    // Predicated region
    $region22: #{tpu_custom_call.1} parent=1 // pred_check
      _
    $region23: #{tpu_custom_call.1} parent=1 // pred_check_branch
      %162 = sbr.rel (0) target = $region25
    $region24: #{tpu_custom_call.1} parent=1 // pred_region
      %163 = dma.done [#allocation4], 512
    $region25: #{tpu_custom_call.1} parent=1 // pred_fallthru
      _
    %164 = vsyncpa [#allocation3], 1
    %165 = vsyncpa [#allocation6], 1
    %166 = vsyncpa [#allocation4], 1

</llo_original>
